<compile_context>
chip_gen: v5e
topology: v5e:2x2
jax: 0.10.0
libtpu: 0.0.40
codegen_flags: <defaults>
</compile_context>

<pallas_src>
import functools

import jax
import jax.numpy as jnp
from jax import lax
from jax.experimental import pallas as pl
from jax.experimental.pallas import tpu as pltpu


def _myloss_kernel(scores_ref, target_ref, weight_ref, out_ref, *,
                   tiles_per_shard, tile_rows, total_rows):
    # scores_ref: (tR, C) native dtype; target_ref: (tR, 1) i32;
    # weight_ref: (tR, 1) f32; out_ref: (1, 1, 1) f32 per-shard partial sum
    # (resident across the inner "arbitrary" axis).
    p = pl.program_id(0)      # parallel shard axis (megacore)
    s = pl.program_id(1)      # sequential tile axis within the shard

    @pl.when(s == 0)
    def _init():
        out_ref[...] = jnp.zeros_like(out_ref)

    scores = scores_ref[...]                                   # (tR, C) native dtype
    target = target_ref[...]                                   # (tR, 1) i32
    tR, C = scores.shape

    # Lane-only class iota; broadcast compare against the per-row target.
    cls_iota = lax.broadcasted_iota(jnp.int32, (1, C), 1)      # (1, C)
    selected = jnp.where(target == cls_iota, scores,
                         jnp.array(0, dtype=scores.dtype))     # (tR, C) native dtype
    # Exactly one nonzero per row -> lane reduce is exact in native dtype;
    # cast to f32 AFTER the reduction (no full-tile f32 temporary).
    picked = jnp.sum(selected, axis=1, keepdims=True).astype(jnp.float32)  # (tR, 1)

    # Mask rows past the flattened length (ragged last tile / clamped OOB tiles).
    blk = p * tiles_per_shard + s
    row = blk * tile_rows + lax.broadcasted_iota(jnp.int32, (tR, 1), 0)
    contrib = jnp.where(row < total_rows, picked * weight_ref[...], 0.0)   # (tR, 1)

    out_ref[...] += jnp.sum(contrib)


def my_loss(scores, target, weighting, *, max_tile_bytes=4 * 1024 * 1024,
            max_shards=2):
    """scores: (S, B, C) f32/bf16 log-probs, target: (S, B) int, weighting: (B,).

    Returns the scalar f32 loss, matching PyTorch MyLoss.forward for in-range targets.
    """
    S, B, C = scores.shape
    R = S * B
    itemsize = jnp.dtype(scores.dtype).itemsize
    bytes_per_row = C * itemsize

    # Rows per tile: ~max_tile_bytes per buffer, multiple of 16 (full bf16 sublane
    # packing; also satisfies the f32 multiple-of-8 block rule).
    rows_fit = max(1, max_tile_bytes // bytes_per_row)
    if rows_fit >= R:
        tR = R                                  # single full-extent block
    else:
        tR = (rows_fit // 16) * 16
        if tR == 0:
            tR = min(8, R)
    num_tiles = pl.cdiv(R, tR)
    num_shards = min(max_shards, num_tiles)     # leading parallel axis (v7x megacore)
    tiles_per_shard = pl.cdiv(num_tiles, num_shards)
    last_blk = num_tiles - 1

    scores_rows = scores.reshape(R, C)
    target_rows = target.reshape(R, 1).astype(jnp.int32)
    weight_rows = jnp.broadcast_to(
        weighting.astype(jnp.float32)[None, :], (S, B)).reshape(R, 1)

    def row_block(p, s):
        # Clamp logically-out-of-range tiles (odd tile counts across shards) onto the
        # last real block; their rows are masked out in-kernel.
        return (jnp.minimum(p * tiles_per_shard + s, last_blk), 0)

    kernel = functools.partial(
        _myloss_kernel, tiles_per_shard=tiles_per_shard, tile_rows=tR,
        total_rows=R)

    cost = pl.CostEstimate(
        flops=R * C,                                    # compare + select, not a matmul
        transcendentals=0,
        bytes_accessed=R * C * itemsize + R * 4 + R * 4 + num_shards * 4,
    )

    partials = pl.pallas_call(
        kernel,
        out_shape=jax.ShapeDtypeStruct((num_shards, 1, 1), jnp.float32),
        grid_spec=pltpu.PrefetchScalarGridSpec(
            num_scalar_prefetch=0,
            grid=(num_shards, tiles_per_shard),
            in_specs=[
                pl.BlockSpec((tR, C), row_block),       # scores tile (native dtype)
                pl.BlockSpec((tR, 1), row_block),       # targets tile (i32)
                pl.BlockSpec((tR, 1), row_block),       # per-row weights tile (f32)
            ],
            out_specs=pl.BlockSpec((1, 1, 1), lambda p, s: (p, 0, 0)),
        ),
        compiler_params=pltpu.CompilerParams(
            dimension_semantics=("parallel", "arbitrary"),
            vmem_limit_bytes=32 * 1024 * 1024,
        ),
        cost_estimate=cost,
    )(scores_rows, target_rows, weight_rows)

    # loss_i = -(1/S) * sum_t scores[t, i, tgt];  out = (1/B) * sum_i loss_i * w_i
    return -jnp.sum(partials) / (S * B)


def my_loss_ref(scores, target, weighting):
    """Pure-JAX reference mirroring the PyTorch module."""
    picked = jnp.take_along_axis(scores, target[:, :, None], axis=2)[..., 0]  # (S, B)
    per_batch = -jnp.mean(picked.astype(jnp.float32), axis=0)                 # (B,)
    return jnp.mean(per_batch * weighting.astype(jnp.float32))


if __name__ == "__main__":
    key = jax.random.PRNGKey(0)
    k1, k2, k3 = jax.random.split(key, 3)

    S, B, C = 37, 8, 128
    logits = jax.random.normal(k1, (S, B, C), dtype=jnp.float32)
    scores = jax.nn.log_softmax(logits, axis=-1)            # log-probs, as nll_loss expects
    target = jax.random.randint(k2, (S, B), 0, C, dtype=jnp.int32)
    weighting = jax.random.uniform(k3, (B,), dtype=jnp.float32)

    ref = my_loss_ref(scores, target, weighting)

    # 1) f32, forced multi-tile + 2 shards: 48-row tiles over 296 rows -> 7 real tiles,
    #    grid (2, 4) with one clamped tile and a ragged last real tile.
    out = my_loss(scores, target, weighting, max_tile_bytes=48 * C * 4)
    out = jax.block_until_ready(out)
    assert jnp.allclose(out, ref, atol=1e-5, rtol=1e-5), (out, ref)

    # 2) f32, default tiling (single full block, 1 shard).
    out_full = jax.block_until_ready(my_loss(scores, target, weighting))
    assert jnp.allclose(out_full, ref, atol=1e-5, rtol=1e-5), (out_full, ref)

    # 3) bf16 scores stay bf16 in HBM/VMEM; cast happens after the lane reduce.
    scores_bf16 = scores.astype(jnp.bfloat16)
    ref_bf = my_loss_ref(scores_bf16.astype(jnp.float32), target, weighting)
    out_bf = jax.block_until_ready(
        my_loss(scores_bf16, target, weighting, max_tile_bytes=32 * C * 2))
    assert jnp.allclose(out_bf, ref_bf, atol=1e-4, rtol=1e-4), (out_bf, ref_bf)

    print("KERNEL_OK")
</pallas_src>

<mosaic_0001>
module attributes {stable_mosaic.version = 11 : i64} {
  func.func @_myloss_kernel(%arg0: i32, %arg1: i32, %arg2: memref<48x128xf32, #tpu.memory_space<vmem>>, %arg3: memref<48x1xi32, #tpu.memory_space<vmem>>, %arg4: memref<48x1xf32, #tpu.memory_space<vmem>>, %arg5: memref<1x1x1xf32, #tpu.memory_space<vmem>>) attributes {dimension_semantics = [#tpu.dimension_semantics<parallel>, #tpu.dimension_semantics<arbitrary>], iteration_bounds = array<i64: 2, 4>, scalar_prefetch = 0 : i64, scratch_operands = 0 : i64, tpu.core_type = #tpu.core_type<tc>, window_params = [{transform_indices = @transform_0, window_bounds = array<i64: 48, 128>}, {transform_indices = @transform_1, window_bounds = array<i64: 48, 1>}, {transform_indices = @transform_2, window_bounds = array<i64: 48, 1>}, {transform_indices = @transform_3, window_bounds = array<i64: 1, 1, 1>}]} {
    %c0_i32 = arith.constant 0 : i32
    %0 = arith.cmpi eq, %arg1, %c0_i32 : i32
    %1 = arith.extui %0 : i1 to i32
    %c0_i32_0 = arith.constant 0 : i32
    %2 = arith.cmpi ne, %1, %c0_i32_0 : i32
    scf.if %2 {
      %cst_15 = arith.constant 0.000000e+00 : f32
      %33 = vector.broadcast %cst_15 : f32 to vector<1x1x1xf32>
      %c0_16 = arith.constant 0 : index
      %c0_17 = arith.constant 0 : index
      %c0_18 = arith.constant 0 : index
      %34 = vector.load %arg5[%c0_16, %c0_17, %c0_18] : memref<1x1x1xf32, #tpu.memory_space<vmem>>, vector<1x1x1xf32>
      tpu.vector_store %arg5[%c0_16, %c0_17, %c0_18], %33 {strides = array<i32>} : memref<1x1x1xf32, #tpu.memory_space<vmem>>, vector<1x1x1xf32>,
    } else {
    }
    %c0 = arith.constant 0 : index
    %c0_1 = arith.constant 0 : index
    %3 = vector.load %arg2[%c0, %c0_1] : memref<48x128xf32, #tpu.memory_space<vmem>>, vector<48x128xf32>
    %c0_2 = arith.constant 0 : index
    %c0_3 = arith.constant 0 : index
    %4 = vector.load %arg3[%c0_2, %c0_3] : memref<48x1xi32, #tpu.memory_space<vmem>>, vector<48x1xi32>
    %5 = tpu.iota {dimensions = array<i32: 1>} : vector<1x128xi32>
    %6 = vector.broadcast %4 : vector<48x1xi32> to vector<48x128xi32>
    %7 = vector.broadcast %5 : vector<1x128xi32> to vector<48x128xi32>
    %8 = arith.cmpi eq, %6, %7 : vector<48x128xi32>
    %cst = arith.constant 0.000000e+00 : f32
    %9 = vector.broadcast %cst : f32 to vector<48x128xf32>
    %10 = arith.select %8, %3, %9 : vector<48x128xi1>, vector<48x128xf32>
    %cst_4 = arith.constant dense<0.000000e+00> : vector<48xf32>
    %11 = vector.multi_reduction <add>, %10, %cst_4 [1] : vector<48x128xf32> to vector<48xf32>
    %12 = vector.shape_cast %11 : vector<48xf32> to vector<48x1xf32>
    %c4_i32 = arith.constant 4 : i32
    %13 = arith.muli %arg0, %c4_i32 : i32
    %14 = arith.addi %13, %arg1 : i32
    %c48_i32 = arith.constant 48 : i32
    %15 = arith.muli %14, %c48_i32 : i32
    %16 = tpu.iota {dimensions = array<i32: 0>} : vector<48x1xi32>
    %17 = vector.broadcast %15 : i32 to vector<48x1xi32>
    %18 = arith.addi %17, %16 : vector<48x1xi32>
    %c296_i32 = arith.constant 296 : i32
    %19 = vector.broadcast %c296_i32 : i32 to vector<48x1xi32>
    %20 = arith.cmpi slt, %18, %19 : vector<48x1xi32>
    %c0_5 = arith.constant 0 : index
    %c0_6 = arith.constant 0 : index
    %21 = vector.load %arg4[%c0_5, %c0_6] : memref<48x1xf32, #tpu.memory_space<vmem>>, vector<48x1xf32>
    %22 = arith.mulf %12, %21 : vector<48x1xf32>
    %cst_7 = arith.constant 0.000000e+00 : f32
    %23 = vector.broadcast %cst_7 : f32 to vector<48x1xf32>
    %24 = arith.select %20, %22, %23 : vector<48x1xi1>, vector<48x1xf32>
    %c0_8 = arith.constant 0 : index
    %c0_9 = arith.constant 0 : index
    %c0_10 = arith.constant 0 : index
    %25 = vector.load %arg5[%c0_8, %c0_9, %c0_10] : memref<1x1x1xf32, #tpu.memory_space<vmem>>, vector<1x1x1xf32>
    %26 = vector.shape_cast %24 : vector<48x1xf32> to vector<1x48x1xf32>
    %cst_11 = arith.constant dense<0.000000e+00> : vector<1xf32>
    %27 = vector.multi_reduction <add>, %26, %cst_11 [1, 2] : vector<1x48x1xf32> to vector<1xf32>
    %28 = vector.shape_cast %27 : vector<1xf32> to vector<1x1x1xf32>
    %29 = vector.extract %28[0, 0, 0] : f32 from vector<1x1x1xf32>
    %30 = vector.broadcast %29 : f32 to vector<1x1x1xf32>
    %31 = arith.addf %25, %30 : vector<1x1x1xf32>
    %c0_12 = arith.constant 0 : index
    %c0_13 = arith.constant 0 : index
    %c0_14 = arith.constant 0 : index
    %32 = vector.load %arg5[%c0_12, %c0_13, %c0_14] : memref<1x1x1xf32, #tpu.memory_space<vmem>>, vector<1x1x1xf32>
    tpu.vector_store %arg5[%c0_12, %c0_13, %c0_14], %31 {strides = array<i32>} : memref<1x1x1xf32, #tpu.memory_space<vmem>>, vector<1x1x1xf32>,
    return
  }
  func.func @transform_0(%arg0: i32, %arg1: i32) -> (i32, i32) {
    %c4_i32 = arith.constant 4 : i32
    %0 = arith.muli %arg0, %c4_i32 : i32
    %1 = arith.addi %0, %arg1 : i32
    %c6_i32 = arith.constant 6 : i32
    %2 = arith.minsi %1, %c6_i32 : i32
    %c0_i32 = arith.constant 0 : i32
    %c0_i32_0 = arith.constant 0 : i32
    return %2, %c0_i32 : i32, i32
  }
  func.func @transform_1(%arg0: i32, %arg1: i32) -> (i32, i32) {
    %c4_i32 = arith.constant 4 : i32
    %0 = arith.muli %arg0, %c4_i32 : i32
    %1 = arith.addi %0, %arg1 : i32
    %c6_i32 = arith.constant 6 : i32
    %2 = arith.minsi %1, %c6_i32 : i32
    %c0_i32 = arith.constant 0 : i32
    %c0_i32_0 = arith.constant 0 : i32
    return %2, %c0_i32 : i32, i32
  }
  func.func @transform_2(%arg0: i32, %arg1: i32) -> (i32, i32) {
    %c4_i32 = arith.constant 4 : i32
    %0 = arith.muli %arg0, %c4_i32 : i32
    %1 = arith.addi %0, %arg1 : i32
    %c6_i32 = arith.constant 6 : i32
    %2 = arith.minsi %1, %c6_i32 : i32
    %c0_i32 = arith.constant 0 : i32
    %c0_i32_0 = arith.constant 0 : i32
    return %2, %c0_i32 : i32, i32
  }
  func.func @transform_3(%arg0: i32, %arg1: i32) -> (i32, i32, i32) {
    %c0_i32 = arith.constant 0 : i32
    %c0_i32_0 = arith.constant 0 : i32
    %c0_i32_1 = arith.constant 0 : i32
    return %arg0, %c0_i32, %c0_i32_0 : i32, i32, i32
  }
}

</mosaic_0001>

<llo_original>
// kernel: tpu_custom_call.1
$region0: #{tpu_custom_call.1}
  #allocation0 [shape = 'u32[]', space=smem, size = 0x4, offset = 0x4, fixed_abs, tag = 'smem constant byte address 0x4 - core index']
  #allocation1 [shape = 'u32[72,128]{1,0:T(1,128)}', space=vmem, size = 0x9000, scoped, tag = 'internal scratch']
  %s0 = inlined_call_operand.vmem [shape: f32[296,128], index: 0, kind: input, shape index: {}]
  %s1 = inlined_call_operand.vmem [shape: s32[296,1], index: 1, kind: input, shape index: {}]
  %s2 = inlined_call_operand.vmem [shape: f32[296,1], index: 2, kind: input, shape index: {}]
  %s3 = inlined_call_operand.vmem [shape: f32[2,1,1], index: 3, kind: output, shape index: {}]
  %s4 = sld [smem:[#allocation0]]
  $region49: #{tpu_custom_call.1} parent=0
    _
  %s6 = ssub.s32 1, %s4
  %s7 = scalar_select 0, %s6, %s4
  loop: start=0, step=1, limit=10
  $region2: #{tpu_custom_call.1} parent=0 // loop_pre_header
    _
  $region3: #{tpu_custom_call.1} parent=0 // loop_header
    %s9 = sphi 0, %s13
    %p10 = scmp.ge.s32.totalorder %s9, 10
    %s16 = sphi 0, %s28
    %s17 = sphi 0, %s24
    %s18 = sphi 0, %s16
    %s19 = sphi 0, %s17
    %s20 = sphi 0, %s18
    %s21 = sphi 0, %s19
    %s39 = sphi 0, %s41
    %s42 = sphi 0, %s39
    %s43 = sphi 0, %s42
    %s59 = sphi 0, %s43
    %s73 = sphi 0, %s75
    %s76 = sphi 0, %s73
    %s77 = sphi 0, %s76
    %s93 = sphi 0, %s77
    %s107 = sphi 0, %s109
    %s110 = sphi 0, %s107
    %s111 = sphi 0, %s110
    %s127 = sphi 0, %s111
    %s133 = sphi 0, %s135
    %s136 = sphi 0, %s133
    %s137 = sphi 0, %s136
    %s153 = sphi 0, %s137
  $region4: #{tpu_custom_call.1} parent=0 // loop_header_branch
    %12 = sbr.rel (%p10) target = $region8
  $region5: #{tpu_custom_call.1} parent=0 // loop_body
    %s14 = ssub.s32 %s9, 1
    %s15 = ssub.s32 %s9, 2
    %s22 = sadd.s32 1, %s17
    %p23 = scmp.ge.s32.totalorder %s22, 4
    %s24 = scalar_select %p23, 0, %s22
    %s25 = sadd.s32 1, %s16
    %s26 = scalar_select %p23, %s25, %s16
    %p27 = scmp.ge.s32.totalorder %s26, 2
    %s28 = scalar_select %p27, 0, %s26
    %s29 = smul.u32 %s16, 4
    %s30 = sadd.s32 %s29, %s17
    %p31 = scmp.lt.s32.totalorder %s30, 6
    %s32 = scalar_select %p31, %s30, 6
    %s33 = smul.u32 %s28, 4
    %s34 = sadd.s32 %s33, %s24
    %p35 = scmp.lt.s32.totalorder %s34, 6
    %s36 = scalar_select %p35, %s34, 6
    %s37 = ssub.s32 %s32, %s36
    %p38 = scmp.eq.s32.totalorder %s37, 0
    %s40 = sadd.s32 %s39, 1
    %s41 = scalar_select %p38, %s39, %s40
    %p44 = pneg %p38
    %p45 = scmp.eq.s32.totalorder %s9, 7
    %p46 = por %p44, %p45
    %p47 = scmp.ne.s32.totalorder %s39, %s42
    %p48 = scmp.eq.s32.totalorder %s9, 0
    %p49 = por %p47, %p48
    %p50 = scmp.ne.s32.totalorder %s39, %s42
    %p51 = scmp.eq.s32.totalorder %s14, 7
    %p52 = por %p50, %p51
    %p53 = scmp.ne.s32.totalorder %s42, %s43
    %p54 = scmp.eq.s32.totalorder %s14, 0
    %p55 = por %p53, %p54
    %p56 = scmp.ne.s32.totalorder %s42, %s43
    %p57 = scmp.eq.s32.totalorder %s15, 7
    %p58 = por %p56, %p57
    %p60 = scmp.ne.s32.totalorder %s43, %s59
    %p61 = scmp.eq.s32.totalorder %s15, 0
    %p62 = por %p60, %p61
    %s63 = smul.u32 %s16, 4
    %s64 = sadd.s32 %s63, %s17
    %p65 = scmp.lt.s32.totalorder %s64, 6
    %s66 = scalar_select %p65, %s64, 6
    %s67 = smul.u32 %s28, 4
    %s68 = sadd.s32 %s67, %s24
    %p69 = scmp.lt.s32.totalorder %s68, 6
    %s70 = scalar_select %p69, %s68, 6
    %s71 = ssub.s32 %s66, %s70
    %p72 = scmp.eq.s32.totalorder %s71, 0
    %s74 = sadd.s32 %s73, 1
    %s75 = scalar_select %p72, %s73, %s74
    %p78 = pneg %p72
    %p79 = scmp.eq.s32.totalorder %s9, 7
    %p80 = por %p78, %p79
    %p81 = scmp.ne.s32.totalorder %s73, %s76
    %p82 = scmp.eq.s32.totalorder %s9, 0
    %p83 = por %p81, %p82
    %p84 = scmp.ne.s32.totalorder %s73, %s76
    %p85 = scmp.eq.s32.totalorder %s14, 7
    %p86 = por %p84, %p85
    %p87 = scmp.ne.s32.totalorder %s76, %s77
    %p88 = scmp.eq.s32.totalorder %s14, 0
    %p89 = por %p87, %p88
    %p90 = scmp.ne.s32.totalorder %s76, %s77
    %p91 = scmp.eq.s32.totalorder %s15, 7
    %p92 = por %p90, %p91
    %p94 = scmp.ne.s32.totalorder %s77, %s93
    %p95 = scmp.eq.s32.totalorder %s15, 0
    %p96 = por %p94, %p95
    %s97 = smul.u32 %s16, 4
    %s98 = sadd.s32 %s97, %s17
    %p99 = scmp.lt.s32.totalorder %s98, 6
    %s100 = scalar_select %p99, %s98, 6
    %s101 = smul.u32 %s28, 4
    %s102 = sadd.s32 %s101, %s24
    %p103 = scmp.lt.s32.totalorder %s102, 6
    %s104 = scalar_select %p103, %s102, 6
    %s105 = ssub.s32 %s100, %s104
    %p106 = scmp.eq.s32.totalorder %s105, 0
    %s108 = sadd.s32 %s107, 1
    %s109 = scalar_select %p106, %s107, %s108
    %p112 = pneg %p106
    %p113 = scmp.eq.s32.totalorder %s9, 7
    %p114 = por %p112, %p113
    %p115 = scmp.ne.s32.totalorder %s107, %s110
    %p116 = scmp.eq.s32.totalorder %s9, 0
    %p117 = por %p115, %p116
    %p118 = scmp.ne.s32.totalorder %s107, %s110
    %p119 = scmp.eq.s32.totalorder %s14, 7
    %p120 = por %p118, %p119
    %p121 = scmp.ne.s32.totalorder %s110, %s111
    %p122 = scmp.eq.s32.totalorder %s14, 0
    %p123 = por %p121, %p122
    %p124 = scmp.ne.s32.totalorder %s110, %s111
    %p125 = scmp.eq.s32.totalorder %s15, 7
    %p126 = por %p124, %p125
    %p128 = scmp.ne.s32.totalorder %s111, %s127
    %p129 = scmp.eq.s32.totalorder %s15, 0
    %p130 = por %p128, %p129
    %s131 = ssub.s32 %s16, %s28
    %p132 = scmp.eq.s32.totalorder %s131, 0
    %s134 = sadd.s32 %s133, 1
    %s135 = scalar_select %p132, %s133, %s134
    %p138 = pneg %p132
    %p139 = scmp.eq.s32.totalorder %s9, 7
    %p140 = por %p138, %p139
    %p141 = scmp.ne.s32.totalorder %s133, %s136
    %p142 = scmp.eq.s32.totalorder %s9, 0
    %p143 = por %p141, %p142
    %p144 = scmp.ne.s32.totalorder %s133, %s136
    %p145 = scmp.eq.s32.totalorder %s14, 7
    %p146 = por %p144, %p145
    %p147 = scmp.ne.s32.totalorder %s136, %s137
    %p148 = scmp.eq.s32.totalorder %s14, 0
    %p149 = por %p147, %p148
    %p150 = scmp.ne.s32.totalorder %s136, %s137
    %p151 = scmp.eq.s32.totalorder %s15, 7
    %p152 = por %p150, %p151
    %p154 = scmp.ne.s32.totalorder %s137, %s153
    %p155 = scmp.eq.s32.totalorder %s15, 0
    %p156 = por %p154, %p155
    %p157 = scmp.le.s32.totalorder 1, %s9
    %p158 = scmp.lt.s32.totalorder %s9, 9
    %p159 = pnand %p157, %p158
    %p160 = pneg %p159
    // Predicated region
    $region9: #{tpu_custom_call.1} parent=5 // pred_check
      _
    $region10: #{tpu_custom_call.1} parent=5 // pred_check_branch
      %162 = sbr.rel (%p159) target = $region12
    $region11: #{tpu_custom_call.1} parent=5 // pred_region
      %s163 = ssub.s32 %s9, 1
    $region12: #{tpu_custom_call.1} parent=5 // pred_fallthru
      _
    %p164 = scmp.lt.s32.totalorder %s9, 8
    // Predicated region
    $region13: #{tpu_custom_call.1} parent=5 // pred_check
      %p165 = pneg %p164
    $region14: #{tpu_custom_call.1} parent=5 // pred_check_branch
      %167 = sbr.rel (%p165) target = $region16
    $region15: #{tpu_custom_call.1} parent=5 // pred_region
      // Predicated region
      $region17: #{tpu_custom_call.1} parent=15 // pred_check
        %p168 = pneg %p49
      $region18: #{tpu_custom_call.1} parent=15 // pred_check_branch
        %170 = sbr.rel (%p168) target = $region20
      $region19: #{tpu_custom_call.1} parent=15 // pred_region
        %s171 = smul.u32 %s16, 4
        %s172 = sadd.s32 %s171, %s17
        %p173 = scmp.lt.s32.totalorder %s172, 6
        %s174 = scalar_select %p173, %s172, 6
        %s175 = smul.u32 6, %s174
        %s176 = ssub.s32 37, %s175
        %p177 = scmp.lt.s32.totalorder %s176, 6
        %s178 = scalar_select %p177, %s176, 6
        %s179 = smul.u32 8, %s178
        %p180 = scmp.lt.s32.totalorder %s175, 36
        %s181 = scalar_select %p180, %s175, 36
        %s182 = smul.addr %s181, 8
        %s183 = scalar_lea.vmem %s0, %s182
        %s184 = smul.u32 %s16, 4
        %s185 = sadd.s32 %s184, %s17
        %p186 = scmp.lt.s32.totalorder %s185, 6
        %s187 = scalar_select %p186, %s185, 6
        %s188 = smul.u32 6, %s187
        %s189 = ssub.s32 37, %s188
        %p190 = scmp.lt.s32.totalorder %s189, 6
        %s191 = scalar_select %p190, %s189, 6
        %s192 = smul.u32 8, %s191
      $region20: #{tpu_custom_call.1} parent=15 // pred_fallthru
        _
      // Predicated region
      $region21: #{tpu_custom_call.1} parent=15 // pred_check
        %p193 = pneg %p83
      $region22: #{tpu_custom_call.1} parent=15 // pred_check_branch
        %195 = sbr.rel (%p193) target = $region24
      $region23: #{tpu_custom_call.1} parent=15 // pred_region
        %s196 = smul.u32 %s16, 4
        %s197 = sadd.s32 %s196, %s17
        %p198 = scmp.lt.s32.totalorder %s197, 6
        %s199 = scalar_select %p198, %s197, 6
        %s200 = smul.u32 6, %s199
        %s201 = ssub.s32 37, %s200
        %p202 = scmp.lt.s32.totalorder %s201, 6
        %s203 = scalar_select %p202, %s201, 6
        %s204 = smul.u32 8, %s203
        %p205 = scmp.lt.s32.totalorder %s200, 36
        %s206 = scalar_select %p205, %s200, 36
        %s207 = smul.addr %s206, 8
        %s208 = scalar_lea.vmem %s1, %s207
        %s209 = smul.u32 %s16, 4
        %s210 = sadd.s32 %s209, %s17
        %p211 = scmp.lt.s32.totalorder %s210, 6
        %s212 = scalar_select %p211, %s210, 6
        %s213 = smul.u32 6, %s212
        %s214 = ssub.s32 37, %s213
        %p215 = scmp.lt.s32.totalorder %s214, 6
        %s216 = scalar_select %p215, %s214, 6
        %s217 = smul.u32 8, %s216
      $region24: #{tpu_custom_call.1} parent=15 // pred_fallthru
        _
      // Predicated region
      $region25: #{tpu_custom_call.1} parent=15 // pred_check
        %p218 = pneg %p117
      $region26: #{tpu_custom_call.1} parent=15 // pred_check_branch
        %220 = sbr.rel (%p218) target = $region28
      $region27: #{tpu_custom_call.1} parent=15 // pred_region
        %s221 = smul.u32 %s16, 4
        %s222 = sadd.s32 %s221, %s17
        %p223 = scmp.lt.s32.totalorder %s222, 6
        %s224 = scalar_select %p223, %s222, 6
        %s225 = smul.u32 6, %s224
        %s226 = ssub.s32 37, %s225
        %p227 = scmp.lt.s32.totalorder %s226, 6
        %s228 = scalar_select %p227, %s226, 6
        %s229 = smul.u32 8, %s228
        %p230 = scmp.lt.s32.totalorder %s225, 36
        %s231 = scalar_select %p230, %s225, 36
        %s232 = smul.addr %s231, 8
        %s233 = scalar_lea.vmem %s2, %s232
        %s234 = smul.u32 %s16, 4
        %s235 = sadd.s32 %s234, %s17
        %p236 = scmp.lt.s32.totalorder %s235, 6
        %s237 = scalar_select %p236, %s235, 6
        %s238 = smul.u32 6, %s237
        %s239 = ssub.s32 37, %s238
        %p240 = scmp.lt.s32.totalorder %s239, 6
        %s241 = scalar_select %p240, %s239, 6
        %s242 = smul.u32 8, %s241
      $region28: #{tpu_custom_call.1} parent=15 // pred_fallthru
        _
    $region16: #{tpu_custom_call.1} parent=5 // pred_fallthru
      _
    %p243 = scmp.le.s32.totalorder 1, %s9
    %p244 = scmp.lt.s32.totalorder %s9, 9
    %p245 = pnand %p243, %p244
    %p246 = pneg %p245
    // Predicated region
    $region29: #{tpu_custom_call.1} parent=5 // pred_check
      _
    $region30: #{tpu_custom_call.1} parent=5 // pred_check_branch
      %248 = sbr.rel (%p245) target = $region32
    $region31: #{tpu_custom_call.1} parent=5 // pred_region
      %s249 = ssub.s32 %s9, 1
      %s250 = smul.u32 %s18, 4
      %s251 = sadd.s32 %s250, %s19
      %p252 = scmp.lt.s32.totalorder %s251, 6
      %s253 = scalar_select %p252, %s251, 6
      %s254 = smul.u32 6, %s253
      %s255 = ssub.s32 37, %s254
      %p256 = scmp.lt.s32.totalorder %s255, 6
      %s257 = scalar_select %p256, %s255, 6
      %s258 = smul.u32 8, %s257
      %p259 = scmp.lt.s32.totalorder %s254, 36
      %s260 = scalar_select %p259, %s254, 36
      %s261 = smul.addr %s260, 8
      %s262 = scalar_lea.vmem %s0, %s261
      %p263 = pneg %p55
      %p264 = pneg %p52
      %s265 = smul.u32 %s18, 4
      %s266 = sadd.s32 %s265, %s19
      %p267 = scmp.lt.s32.totalorder %s266, 6
      %s268 = scalar_select %p267, %s266, 6
      %s269 = smul.u32 6, %s268
      %s270 = ssub.s32 37, %s269
      %p271 = scmp.lt.s32.totalorder %s270, 6
      %s272 = scalar_select %p271, %s270, 6
      %s273 = smul.u32 8, %s272
      %p274 = scmp.lt.s32.totalorder %s269, 36
      %s275 = scalar_select %p274, %s269, 36
      %s276 = smul.addr %s275, 8
      %s277 = scalar_lea.vmem %s1, %s276
      %p278 = pneg %p89
      %p279 = pneg %p86
      %s280 = smul.u32 %s18, 4
      %s281 = sadd.s32 %s280, %s19
      %p282 = scmp.lt.s32.totalorder %s281, 6
      %s283 = scalar_select %p282, %s281, 6
      %s284 = smul.u32 6, %s283
      %s285 = ssub.s32 37, %s284
      %p286 = scmp.lt.s32.totalorder %s285, 6
      %s287 = scalar_select %p286, %s285, 6
      %s288 = smul.u32 8, %s287
      %p289 = scmp.lt.s32.totalorder %s284, 36
      %s290 = scalar_select %p289, %s284, 36
      %s291 = smul.addr %s290, 8
      %s292 = scalar_lea.vmem %s2, %s291
      %p293 = pneg %p123
      %p294 = pneg %p120
      %p295 = pneg %p149
      %p296 = pneg %p146
      %p297 = scmp.lt.s32.totalorder %s18, 1
      %s298 = scalar_select %p297, %s18, 1
      %s299 = scalar_lea.vmem %s3, %s298
      %s300 = smul.u32 %s18, 4
      %s301 = sadd.s32 %s300, %s19
      %p302 = scmp.lt.s32.totalorder %s301, 6
      %s303 = scalar_select %p302, %s301, 6
      %s304 = smul.u32 6, %s303
      %s305 = ssub.s32 37, %s304
      %p306 = scmp.lt.s32.totalorder %s305, 6
      %s307 = scalar_select %p306, %s305, 6
      %s308 = smul.u32 8, %s307
      %p309 = scmp.lt.s32.totalorder %s304, 36
      %s310 = scalar_select %p309, %s304, 36
      %s311 = smul.addr %s310, 8
      %s312 = scalar_lea.vmem %s0, %s311
      %s313 = smul.u32 %s18, 4
      %s314 = sadd.s32 %s313, %s19
      %p315 = scmp.lt.s32.totalorder %s314, 6
      %s316 = scalar_select %p315, %s314, 6
      %s317 = smul.u32 6, %s316
      %s318 = ssub.s32 37, %s317
      %p319 = scmp.lt.s32.totalorder %s318, 6
      %s320 = scalar_select %p319, %s318, 6
      %s321 = smul.u32 8, %s320
      %s322 = smul.u32 %s18, 4
      %s323 = sadd.s32 %s322, %s19
      %p324 = scmp.lt.s32.totalorder %s323, 6
      %s325 = scalar_select %p324, %s323, 6
      %s326 = smul.u32 6, %s325
      %s327 = ssub.s32 37, %s326
      %p328 = scmp.lt.s32.totalorder %s327, 6
      %s329 = scalar_select %p328, %s327, 6
      %s330 = smul.u32 8, %s329
      %p331 = scmp.lt.s32.totalorder %s326, 36
      %s332 = scalar_select %p331, %s326, 36
      %s333 = smul.addr %s332, 8
      %s334 = scalar_lea.vmem %s1, %s333
      %s335 = smul.u32 %s18, 4
      %s336 = sadd.s32 %s335, %s19
      %p337 = scmp.lt.s32.totalorder %s336, 6
      %s338 = scalar_select %p337, %s336, 6
      %s339 = smul.u32 6, %s338
      %s340 = ssub.s32 37, %s339
      %p341 = scmp.lt.s32.totalorder %s340, 6
      %s342 = scalar_select %p341, %s340, 6
      %s343 = smul.u32 8, %s342
      %s344 = smul.u32 %s18, 4
      %s345 = sadd.s32 %s344, %s19
      %p346 = scmp.lt.s32.totalorder %s345, 6
      %s347 = scalar_select %p346, %s345, 6
      %s348 = smul.u32 6, %s347
      %s349 = ssub.s32 37, %s348
      %p350 = scmp.lt.s32.totalorder %s349, 6
      %s351 = scalar_select %p350, %s349, 6
      %s352 = smul.u32 8, %s351
      %p353 = scmp.lt.s32.totalorder %s348, 36
      %s354 = scalar_select %p353, %s348, 36
      %s355 = smul.addr %s354, 8
      %s356 = scalar_lea.vmem %s2, %s355
      %s357 = smul.u32 %s18, 4
      %s358 = sadd.s32 %s357, %s19
      %p359 = scmp.lt.s32.totalorder %s358, 6
      %s360 = scalar_select %p359, %s358, 6
      %s361 = smul.u32 6, %s360
      %s362 = ssub.s32 37, %s361
      %p363 = scmp.lt.s32.totalorder %s362, 6
      %s364 = scalar_select %p363, %s362, 6
      %s365 = smul.u32 8, %s364
      %p366 = scmp.lt.s32.totalorder %s18, 1
      %s367 = scalar_select %p366, %s18, 1
      %s368 = scalar_lea.vmem %s3, %s367
      %p369 = scmp.eq.s32.totalorder %s19, 0
      // Predicated region
      $region33: #{tpu_custom_call.1} parent=31 // pred_check
        %p370 = pneg %p369
      $region34: #{tpu_custom_call.1} parent=31 // pred_check_branch
        %372 = sbr.rel (%p370) target = $region36
      $region35: #{tpu_custom_call.1} parent=31 // pred_region
        %vm373 = vcmask 0
        %374 = vst.msk [vmem:[%s368] sm:$0x1] %vm373, 0.0
      $region36: #{tpu_custom_call.1} parent=31 // pred_fallthru
        _
      %v375 = vld [vmem:[%s312] sm:$0xff]
      %v376 = vld [vmem:[%s312 + $0x8] sm:$0xff]
      %v377 = vld [vmem:[%s312 + $0x10] sm:$0xff]
      %v378 = vld [vmem:[%s312 + $0x18] sm:$0xff]
      %v379 = vld [vmem:[%s312 + $0x20] sm:$0xff]
      %v380 = vld [vmem:[%s312 + $0x28] sm:$0xff]
      %v381 = vld [vmem:[%s334] sm:$0xff]
      %v382 = vld [vmem:[%s334 + $0x8] sm:$0xff]
      %v383 = vld [vmem:[%s334 + $0x10] sm:$0xff]
      %v384 = vld [vmem:[%s334 + $0x18] sm:$0xff]
      %v385 = vld [vmem:[%s334 + $0x20] sm:$0xff]
      %v386 = vld [vmem:[%s334 + $0x28] sm:$0xff]
      %v387 = vlaneseq
      %v388 = vand.u32 %v387, 127
      %389 = vset.pattern.permute.xlu0 0
      %390 = vperm.xlu0 %389, %v381
      %v391 = vpop.permute.xlu0 %390
      %392 = vset.pattern.permute.xlu0 0
      %393 = vperm.xlu0 %392, %v382
      %v394 = vpop.permute.xlu0 %393
      %395 = vset.pattern.permute.xlu0 0
      %396 = vperm.xlu0 %395, %v383
      %v397 = vpop.permute.xlu0 %396
      %398 = vset.pattern.permute.xlu0 0
      %399 = vperm.xlu0 %398, %v384
      %v400 = vpop.permute.xlu0 %399
      %401 = vset.pattern.permute.xlu0 0
      %402 = vperm.xlu0 %401, %v385
      %v403 = vpop.permute.xlu0 %402
      %404 = vset.pattern.permute.xlu0 0
      %405 = vperm.xlu0 %404, %v386
      %v406 = vpop.permute.xlu0 %405
      %vm407 = vcmp.eq.s32.totalorder %v391, %v388
      %vm408 = vcmp.eq.s32.totalorder %v394, %v388
      %vm409 = vcmp.eq.s32.totalorder %v397, %v388
      %vm410 = vcmp.eq.s32.totalorder %v400, %v388
      %vm411 = vcmp.eq.s32.totalorder %v403, %v388
      %vm412 = vcmp.eq.s32.totalorder %v406, %v388
      %v413 = vsel %vm407, %v375, 0.0
      %v414 = vsel %vm408, %v376, 0.0
      %v415 = vsel %vm409, %v377, 0.0
      %v416 = vsel %vm410, %v378, 0.0
      %v417 = vsel %vm411, %v379, 0.0
      %v418 = vsel %vm412, %v380, 0.0
      %419 = vadd.xlane.f32.xlu0 %v413
      %v420 = vpop.xlane.xlu0 %419
      %421 = vadd.xlane.f32.xlu0 %v414
      %v422 = vpop.xlane.xlu0 %421
      %423 = vadd.xlane.f32.xlu0 %v415
      %v424 = vpop.xlane.xlu0 %423
      %425 = vadd.xlane.f32.xlu0 %v416
      %v426 = vpop.xlane.xlu0 %425
      %427 = vadd.xlane.f32.xlu0 %v417
      %v428 = vpop.xlane.xlu0 %427
      %429 = vadd.xlane.f32.xlu0 %v418
      %v430 = vpop.xlane.xlu0 %429
      %s431 = smul.u32 %s18, 4
      %s432 = sadd.s32 %s431, %s19
      %s433 = smul.u32 %s432, 48
      %v434 = vlaneseq
      %v435 = vshrl.u32 %v434, 7
      %v436 = vadd.s32 %v435, 8
      %v437 = vadd.s32 %v435, 16
      %v438 = vadd.s32 %v435, 24
      %v439 = vadd.s32 %v435, 32
      %v440 = vadd.s32 %v435, 40
      %v441 = vstv %s433
      %v442 = vadd.s32 %v441, %v435
      %v443 = vadd.s32 %v441, %v436
      %v444 = vadd.s32 %v441, %v437
      %v445 = vadd.s32 %v441, %v438
      %v446 = vadd.s32 %v441, %v439
      %v447 = vadd.s32 %v441, %v440
      %vm448 = vcmp.lt.s32.totalorder %v442, 296
      %vm449 = vcmp.lt.s32.totalorder %v443, 296
      %vm450 = vcmp.lt.s32.totalorder %v444, 296
      %vm451 = vcmp.lt.s32.totalorder %v445, 296
      %vm452 = vcmp.lt.s32.totalorder %v446, 296
      %vm453 = vcmp.lt.s32.totalorder %v447, 296
      %v454 = vld [vmem:[%s356] sm:$0xff]
      %v455 = vld [vmem:[%s356 + $0x8] sm:$0xff]
      %v456 = vld [vmem:[%s356 + $0x10] sm:$0xff]
      %v457 = vld [vmem:[%s356 + $0x18] sm:$0xff]
      %v458 = vld [vmem:[%s356 + $0x20] sm:$0xff]
      %v459 = vld [vmem:[%s356 + $0x28] sm:$0xff]
      %v460 = vmul.f32 %v420, %v454
      %v461 = vmul.f32 %v422, %v455
      %v462 = vmul.f32 %v424, %v456
      %v463 = vmul.f32 %v426, %v457
      %v464 = vmul.f32 %v428, %v458
      %v465 = vmul.f32 %v430, %v459
      %v466 = vsel %vm448, %v460, 0.0
      %v467 = vsel %vm449, %v461, 0.0
      %v468 = vsel %vm450, %v462, 0.0
      %v469 = vsel %vm451, %v463, 0.0
      %v470 = vsel %vm452, %v464, 0.0
      %v471 = vsel %vm453, %v465, 0.0
      %v472 = vld [vmem:[%s368] sm:$0x1]
      %vm473 = vcmask 7168
      %v474 = vsel %vm473, %v466, 0.0
      %v475 = vsel %vm473, %v467, 0.0
      %v476 = vadd.f32 %v474, %v475
      %v477 = vsel %vm473, %v468, 0.0
      %v478 = vadd.f32 %v476, %v477
      %v479 = vsel %vm473, %v469, 0.0
      %v480 = vadd.f32 %v478, %v479
      %v481 = vsel %vm473, %v470, 0.0
      %v482 = vadd.f32 %v480, %v481
      %v483 = vsel %vm473, %v471, 0.0
      %v484 = vadd.f32 %v482, %v483
      %485 = vadd.xlane.f32.xlu0 %v484
      %v486 = vpop.xlane.xlu0 %485
      %v487 = vrot.slane %v486, 4
      %v488 = vadd.f32 %v486, %v487
      %v489 = vrot.slane %v488, 2
      %v490 = vadd.f32 %v488, %v489
      %v491 = vrot.slane %v490, 1
      %v492 = vadd.f32 %v490, %v491
      %s493 = vtos %v492
      %v494 = vstv %s493
      %v495 = vadd.f32 %v472, %v494
      %vm496 = vcmask 0
      %497 = vst.msk [vmem:[%s368] sm:$0x1] %vm496, %v495
      %p498 = scmp.lt.s32.totalorder %s18, 1
      %s499 = scalar_select %p498, %s18, 1
      %s500 = scalar_lea.vmem %s3, %s499
      // Predicated region
      $region37: #{tpu_custom_call.1} parent=31 // pred_check
        %p501 = pneg %p146
      $region38: #{tpu_custom_call.1} parent=31 // pred_check_branch
        %503 = sbr.rel (%p501) target = $region40
      $region39: #{tpu_custom_call.1} parent=31 // pred_region
        _
      $region40: #{tpu_custom_call.1} parent=31 // pred_fallthru
        _
    $region32: #{tpu_custom_call.1} parent=5 // pred_fallthru
      _
    %p504 = scmp.le.s32.totalorder 2, %s9
    // Predicated region
    $region41: #{tpu_custom_call.1} parent=5 // pred_check
      %p505 = pneg %p504
    $region42: #{tpu_custom_call.1} parent=5 // pred_check_branch
      %507 = sbr.rel (%p505) target = $region44
    $region43: #{tpu_custom_call.1} parent=5 // pred_region
      %s508 = ssub.s32 %s9, 2
      // Predicated region
      $region45: #{tpu_custom_call.1} parent=43 // pred_check
        %p509 = pneg %p152
      $region46: #{tpu_custom_call.1} parent=43 // pred_check_branch
        %511 = sbr.rel (%p509) target = $region48
      $region47: #{tpu_custom_call.1} parent=43 // pred_region
        %p512 = scmp.lt.s32.totalorder %s20, 1
        %s513 = scalar_select %p512, %s20, 1
        %s514 = scalar_lea.vmem %s3, %s513
      $region48: #{tpu_custom_call.1} parent=43 // pred_fallthru
        _
    $region44: #{tpu_custom_call.1} parent=5 // pred_fallthru
      _
  $region6: #{tpu_custom_call.1} parent=0 // loop_footer
    %s13 = sadd.s32 1, %s9
  $region7: #{tpu_custom_call.1} parent=0 // loop_footer_branch
    %8 = sbr.rel target = $region3
  $region8: #{tpu_custom_call.1} parent=0 // loop_exit
    _

</llo_original>
